<compile_context>
chip_gen: v7x
topology: tpu7x:2x2x1
jax: 0.10.0
libtpu: 0.0.40
codegen_flags: <defaults>
</compile_context>

<pallas_src>
import jax
import jax.numpy as jnp
from jax import lax
from jax.experimental import pallas as pl
from jax.experimental.pallas import tpu as pltpu

EPS = 1e-6  # matches `eps = 1e-06` in hacked_group_norm_forward

_VMEM_LIMIT_BYTES = 48 * 1024 * 1024   # explicit scoped-VMEM limit (safe on v5e/v6e/v7x)
_TILE_BUDGET_BYTES = 20 * 1024 * 1024  # 2x double-buffered (in+out) tiles stay under this


def _sublane(dtype):
    return 16 if jnp.dtype(dtype).itemsize == 2 else 8


def _choose_block_rows(nc, hw, dtype):
    """Largest sublane-aligned row-tile whose double-buffered in+out footprint
    fits the tile budget (and never exceeds the padded row count)."""
    itemsize = jnp.dtype(dtype).itemsize
    sub = _sublane(dtype)
    rows = _TILE_BUDGET_BYTES // (4 * hw * itemsize)   # 2 bufs x (in + out)
    rows = max(sub, (rows // sub) * sub)
    nc_ceil = pl.cdiv(nc, sub) * sub
    return int(min(rows, nc_ceil))


def _pad_rows(a, nc_pad):
    nc = a.shape[0]
    if nc_pad == nc:
        return a
    return jnp.pad(a, ((0, nc_pad - nc),) + ((0, 0),) * (a.ndim - 1))


# ---------------------------------------------------------------------------
# Kernel 1: Write pass — spatial mean / var (correction=0) per (n, c) row.
# ---------------------------------------------------------------------------
def _stats_kernel(x_ref, mean_ref, var_ref):
    x = x_ref[...].astype(jnp.float32)                         # (rows, HW)
    hw_inv = jnp.float32(1.0 / x.shape[-1])
    mean = jnp.sum(x, axis=-1, keepdims=True) * hw_inv
    ex2 = jnp.sum(x * x, axis=-1, keepdims=True) * hw_inv
    var = jnp.maximum(ex2 - mean * mean, 0.0)                  # single-pass var
    mean_ref[...] = mean
    var_ref[...] = var


def spatial_var_mean(r_flat, *, block_rows=None):
    """r_flat: [NC, HW] -> (var [NC,1], mean [NC,1]) like torch.var_mean(dim=(2,3))."""
    nc, hw = r_flat.shape
    if block_rows is None:
        block_rows = _choose_block_rows(nc, hw, r_flat.dtype)
    grid_n = int(pl.cdiv(nc, block_rows))
    nc_pad = grid_n * block_rows
    r_pad = _pad_rows(r_flat, nc_pad)

    itemsize = jnp.dtype(r_flat.dtype).itemsize
    cost = pl.CostEstimate(
        flops=4 * nc_pad * hw,
        transcendentals=0,
        bytes_accessed=nc_pad * hw * itemsize + 2 * nc_pad * 4,
    )

    mean, var = pl.pallas_call(
        _stats_kernel,
        out_shape=(
            jax.ShapeDtypeStruct((nc_pad, 1), jnp.float32),
            jax.ShapeDtypeStruct((nc_pad, 1), jnp.float32),
        ),
        grid_spec=pl.GridSpec(
            grid=(grid_n,),
            in_specs=[pl.BlockSpec((block_rows, hw), lambda i: (i, 0))],
            out_specs=(
                pl.BlockSpec((block_rows, 1), lambda i: (i, 0)),
                pl.BlockSpec((block_rows, 1), lambda i: (i, 0)),
            ),
        ),
        compiler_params=pltpu.CompilerParams(
            dimension_semantics=("parallel",),
            vmem_limit_bytes=_VMEM_LIMIT_BYTES),
        cost_estimate=cost,
    )(r_pad)
    return var[:nc], mean[:nc]


# ---------------------------------------------------------------------------
# Kernel 2: Read pass — AdaIN re-normalization + uc masking + style-cfg blend,
# folded into a per-row affine y = A*x + B.
# ---------------------------------------------------------------------------
def _adain_read_kernel(x_ref, stats_ref, y_ref):
    rows = x_ref.shape[0]
    row0 = pl.multiple_of(pl.program_id(0) * rows, rows)
    st = stats_ref[pl.ds(row0, rows), :].astype(jnp.float32)   # (rows, 3), resident
    mean_acc = st[:, 0:1]
    std_acc = st[:, 1:2]
    w = st[:, 2:3]                                             # style_cfg on uc rows else 0

    x = x_ref[...].astype(jnp.float32)                         # (rows, HW)
    hw_inv = jnp.float32(1.0 / x.shape[-1])
    mean = jnp.sum(x, axis=-1, keepdims=True) * hw_inv
    ex2 = jnp.sum(x * x, axis=-1, keepdims=True) * hw_inv
    var = jnp.maximum(ex2 - mean * mean, 0.0)
    inv_std = lax.rsqrt(jnp.maximum(var, EPS))                 # per-row EUP rsqrt

    # y_uc = (x - mean) * inv_std * std_acc + mean_acc  ==  a0*x + b0
    a0 = inv_std * std_acc
    b0 = mean_acc - mean * a0
    # y = (1-w)*y_uc + w*x  ==  A*x + B   (per-row scalars)
    one_minus_w = 1.0 - w
    a = one_minus_w * a0 + w
    b = one_minus_w * b0
    y_ref[...] = (a * x + b).astype(y_ref.dtype)


def adain_read(x_flat, mean_acc, var_acc, uc_mask, *, style_cfg, block_rows=None):
    """x_flat: [NC, HW]; mean_acc/var_acc/uc_mask: [NC, 1]."""
    nc, hw = x_flat.shape
    if block_rows is None:
        block_rows = _choose_block_rows(nc, hw, x_flat.dtype)
    grid_n = int(pl.cdiv(nc, block_rows))
    nc_pad = grid_n * block_rows

    style_cfg = float(style_cfg)
    # Fold uc-row selection and style_cfg into a per-row blend weight w.
    w_scalar = style_cfg if style_cfg > 1e-5 else 0.0
    std_acc = jnp.sqrt(jnp.maximum(var_acc.astype(jnp.float32), EPS))
    w_rows = uc_mask.astype(jnp.float32) * jnp.float32(w_scalar)
    stats = jnp.concatenate(
        [mean_acc.astype(jnp.float32), std_acc, w_rows], axis=1)   # [NC, 3]

    x_pad = _pad_rows(x_flat, nc_pad)
    stats_pad = _pad_rows(stats, nc_pad)

    itemsize = jnp.dtype(x_flat.dtype).itemsize
    cost = pl.CostEstimate(
        flops=7 * nc_pad * hw,
        transcendentals=nc_pad,
        bytes_accessed=2 * nc_pad * hw * itemsize + 3 * nc_pad * 4,
    )

    y_pad = pl.pallas_call(
        _adain_read_kernel,
        out_shape=jax.ShapeDtypeStruct((nc_pad, hw), x_flat.dtype),
        grid_spec=pl.GridSpec(
            grid=(grid_n,),
            in_specs=[
                pl.BlockSpec((block_rows, hw), lambda i: (i, 0)),
                # tiny per-row stats: fetched ONCE, resident across the grid
                pl.BlockSpec((nc_pad, 3), lambda i: (0, 0)),
            ],
            out_specs=pl.BlockSpec((block_rows, hw), lambda i: (i, 0)),
        ),
        compiler_params=pltpu.CompilerParams(
            dimension_semantics=("parallel",),
            vmem_limit_bytes=_VMEM_LIMIT_BYTES),
        cost_estimate=cost,
    )(x_pad, stats_pad)
    return y_pad[:nc]


# ---------------------------------------------------------------------------
# UnetHook-equivalent: group-norm hook state machine (Write then Read).
# ---------------------------------------------------------------------------
class UnetHookGN:
    """JAX/Pallas counterpart of UnetHook's hacked_group_norm_forward path."""

    def __init__(self, style_cfg=0.5, uc_indices=(0,)):
        self.style_cfg = float(style_cfg)
        self.uc_indices = tuple(uc_indices)
        self.mean_bank = []
        self.var_bank = []
        self.style_cfgs = []

    def write(self, r_nchw):
        """AutoMachine.Write: bank spatial stats of the reference feature."""
        n, c, h, w = r_nchw.shape
        r_flat = r_nchw.reshape(n * c, h * w)
        var, mean = spatial_var_mean(r_flat)
        self.mean_bank.append(mean)
        self.var_bank.append(var)
        self.style_cfgs.append(self.style_cfg)

    def read(self, x_nchw):
        """AutoMachine.Read: AdaIN the generated feature toward banked stats."""
        if not self.mean_bank:
            return x_nchw
        n, c, h, w = x_nchw.shape
        x_flat = x_nchw.reshape(n * c, h * w)
        style_cfg = sum(self.style_cfgs) / float(len(self.style_cfgs))
        mean_acc = sum(self.mean_bank) / float(len(self.mean_bank))
        var_acc = sum(self.var_bank) / float(len(self.var_bank))
        # rows of x_flat belonging to unconditional batch indices
        batch_of_row = jnp.repeat(jnp.arange(n), c)
        uc_mask = jnp.isin(batch_of_row,
                           jnp.asarray(self.uc_indices, jnp.int32)
                           ).astype(jnp.float32).reshape(n * c, 1)
        y_flat = adain_read(x_flat, mean_acc, var_acc, uc_mask,
                            style_cfg=style_cfg)
        self.mean_bank, self.var_bank, self.style_cfgs = [], [], []
        return y_flat.reshape(n, c, h, w).astype(x_nchw.dtype)


# TODO(synk): hacked_basic_transformer_inner_forward (attention bank / style
# blending) depends on the UNet's attn1/attn2/ff submodules, which are not part
# of UnetHook itself; only the group-norm AdaIN hot path is kernelized here.


# ---------------------------------------------------------------------------
# Reference (pure jnp) for validation, mirroring the torch code literally.
# ---------------------------------------------------------------------------
def _reference(x, r, style_cfg, uc_indices):
    mean_r = jnp.mean(r, axis=(2, 3), keepdims=True)
    var_r = jnp.mean((r - mean_r) ** 2, axis=(2, 3), keepdims=True)
    mean = jnp.mean(x, axis=(2, 3), keepdims=True)
    var = jnp.mean((x - mean) ** 2, axis=(2, 3), keepdims=True)
    std = jnp.maximum(var, EPS) ** 0.5
    std_acc = jnp.maximum(var_r, EPS) ** 0.5
    y_uc = (x - mean) / std * std_acc + mean_r
    y_c = y_uc.at[jnp.asarray(uc_indices)].set(x[jnp.asarray(uc_indices)])
    return style_cfg * y_c + (1.0 - style_cfg) * y_uc


if __name__ == "__main__":
    key = jax.random.PRNGKey(0)
    kx, kr = jax.random.split(key)

    N, C, H, W = 2, 4, 16, 16          # small NCHW feature maps (HW = 256)
    x = jax.random.normal(kx, (N, C, H, W), jnp.float32)              # generated feat
    r = 2.0 * jax.random.normal(kr, (N, C, H, W), jnp.float32) + 0.5  # ref feat

    hook = UnetHookGN(style_cfg=0.5, uc_indices=(0,))
    hook.write(r)              # Write pass: bank reference spatial stats (Pallas)
    y = hook.read(x)           # Read pass: AdaIN blend (Pallas)
    y = jax.block_until_ready(y)

    y_ref = _reference(x, r, 0.5, (0,))
    assert jnp.allclose(y, y_ref, atol=1e-4, rtol=1e-4), "mismatch vs reference"

    print("KERNEL_OK")
</pallas_src>

<mosaic_0001>
module attributes {stable_mosaic.version = 11 : i64} {
  func.func @_stats_kernel(%arg0: i32, %arg1: memref<8x256xf32, #tpu.memory_space<vmem>>, %arg2: memref<8x1xf32, #tpu.memory_space<vmem>>, %arg3: memref<8x1xf32, #tpu.memory_space<vmem>>) attributes {dimension_semantics = [#tpu.dimension_semantics<parallel>], iteration_bounds = array<i64: 1>, scalar_prefetch = 0 : i64, scratch_operands = 0 : i64, tpu.core_type = #tpu.core_type<tc>, window_params = [{transform_indices = @transform_0, window_bounds = array<i64: 8, 256>}, {transform_indices = @transform_1, window_bounds = array<i64: 8, 1>}, {transform_indices = @transform_2, window_bounds = array<i64: 8, 1>}]} {
    %c0 = arith.constant 0 : index
    %c0_0 = arith.constant 0 : index
    %0 = vector.load %arg1[%c0, %c0_0] : memref<8x256xf32, #tpu.memory_space<vmem>>, vector<8x256xf32>
    %cst = arith.constant dense<0.000000e+00> : vector<8xf32>
    %1 = vector.multi_reduction <add>, %0, %cst [1] : vector<8x256xf32> to vector<8xf32>
    %2 = vector.shape_cast %1 : vector<8xf32> to vector<8x1xf32>
    %cst_1 = arith.constant 3.906250e-03 : f32
    %3 = vector.broadcast %cst_1 : f32 to vector<8x1xf32>
    %4 = arith.mulf %2, %3 : vector<8x1xf32>
    %5 = arith.mulf %0, %0 : vector<8x256xf32>
    %cst_2 = arith.constant dense<0.000000e+00> : vector<8xf32>
    %6 = vector.multi_reduction <add>, %5, %cst_2 [1] : vector<8x256xf32> to vector<8xf32>
    %7 = vector.shape_cast %6 : vector<8xf32> to vector<8x1xf32>
    %cst_3 = arith.constant 3.906250e-03 : f32
    %8 = vector.broadcast %cst_3 : f32 to vector<8x1xf32>
    %9 = arith.mulf %7, %8 : vector<8x1xf32>
    %10 = arith.mulf %4, %4 : vector<8x1xf32>
    %11 = arith.subf %9, %10 : vector<8x1xf32>
    %cst_4 = arith.constant 0.000000e+00 : f32
    %12 = vector.broadcast %cst_4 : f32 to vector<8x1xf32>
    %13 = arith.maximumf %11, %12 : vector<8x1xf32>
    %c0_5 = arith.constant 0 : index
    %c0_6 = arith.constant 0 : index
    %14 = vector.load %arg2[%c0_5, %c0_6] : memref<8x1xf32, #tpu.memory_space<vmem>>, vector<8x1xf32>
    tpu.vector_store %arg2[%c0_5, %c0_6], %4 {strides = array<i32>} : memref<8x1xf32, #tpu.memory_space<vmem>>, vector<8x1xf32>,
    %c0_7 = arith.constant 0 : index
    %c0_8 = arith.constant 0 : index
    %15 = vector.load %arg3[%c0_7, %c0_8] : memref<8x1xf32, #tpu.memory_space<vmem>>, vector<8x1xf32>
    tpu.vector_store %arg3[%c0_7, %c0_8], %13 {strides = array<i32>} : memref<8x1xf32, #tpu.memory_space<vmem>>, vector<8x1xf32>,
    return
  }
  func.func @transform_0(%arg0: i32) -> (i32, i32) {
    %c0_i32 = arith.constant 0 : i32
    %c0_i32_0 = arith.constant 0 : i32
    return %arg0, %c0_i32 : i32, i32
  }
  func.func @transform_1(%arg0: i32) -> (i32, i32) {
    %c0_i32 = arith.constant 0 : i32
    %c0_i32_0 = arith.constant 0 : i32
    return %arg0, %c0_i32 : i32, i32
  }
  func.func @transform_2(%arg0: i32) -> (i32, i32) {
    %c0_i32 = arith.constant 0 : i32
    %c0_i32_0 = arith.constant 0 : i32
    return %arg0, %c0_i32 : i32, i32
  }
}

</mosaic_0001>

<llo_original>
// kernel: tpu_custom_call.1
$region0: #{tpu_custom_call.1}
  #allocation0 [shape = 'u32[]', space=smem, size = 0x4, offset = 0x4, fixed_abs, tag = 'smem constant byte address 0x4 - core index']
  #allocation1 [shape = 'u32[144,128]{1,0:T(1,128)}', space=vmem, size = 0x12000, scoped, tag = 'internal scratch']
  %s0 = inlined_call_operand.hbm [shape: f32[8,256], index: 0, kind: input, shape index: {}]
  %s1 = inlined_call_operand.vmem [shape: f32[8,1], index: 1, kind: output, shape index: {0}]
  %s2 = inlined_call_operand.vmem [shape: f32[8,1], index: 2, kind: output, shape index: {1}]
  %3 = xla_tuple %s1, %s2
  %s4 = sld [smem:[#allocation0]]
  $region26: #{tpu_custom_call.1} parent=0
    _
  %s6 = ssub.s32 1, %s4
  %s7 = scalar_select 0, %s6, %s4
  $region1: #{tpu_custom_call.1} parent=0
    #allocation2 [shape = 'u8[8192]{0}', space=vmem, size = 0x2000, scoped, tag = 'input window, operand 0, single buffered']
    #allocation3 [shape = 's32[1]{0}', space=sflag, size = 0x4, scoped, tag = 'scoped memory for tpu_custom_call.1']
    %8 = vsyncpa [#allocation3], 0
    // Predicated region
    $region2: #{tpu_custom_call.1} parent=1 // pred_check
      _
    $region3: #{tpu_custom_call.1} parent=1 // pred_check_branch
      %10 = sbr.rel (0) target = $region5
    $region4: #{tpu_custom_call.1} parent=1 // pred_region
      %s12 = ssub.s32 256, 256
      %13 = vsyncadd [#allocation3], %s12
      %s15 = sshll.u32 [#allocation2], 4
      %s16 = int_to_ptr.vmem [resolvable:$true] %s15
      %18 = dma.hbm_to_vmem [thread:$0]  %s0, 256, %s16, [#allocation3]
    $region5: #{tpu_custom_call.1} parent=1 // pred_fallthru
      _
    // Predicated region
    $region6: #{tpu_custom_call.1} parent=1 // pred_check
      _
    $region7: #{tpu_custom_call.1} parent=1 // pred_check_branch
      %20 = sbr.rel (0) target = $region9
    $region8: #{tpu_custom_call.1} parent=1 // pred_region
      %21 = dma.done [#allocation3], 256
    $region9: #{tpu_custom_call.1} parent=1 // pred_fallthru
      _
    %v22 = vld [vmem:[#allocation2] sm:$0xff]
    %v23 = vld [vmem:[#allocation2 + $0x8] sm:$0xff]
    %v24 = vadd.f32 %v22, %v23
    %25 = vadd.xlane.f32.xlu0 %v24
    %v26 = vpop.xlane.xlu0 %25
    %v27 = vmul.f32 %v26, 0.00390625
    %v28 = vmul.f32 %v22, %v22
    %v29 = vmul.f32 %v23, %v23
    %v30 = vadd.f32 %v28, %v29
    %31 = vadd.xlane.f32.xlu0 %v30
    %v32 = vpop.xlane.xlu0 %31
    %v33 = vmul.f32 %v32, 0.00390625
    %v34 = vmul.f32 %v27, %v27
    %v35 = vsub.f32 %v33, %v34
    %v36 = vmax.f32 %v35, 0.0
    %vm37 = vcmask 7168
    %38 = vst.msk [vmem:[%s1] sm:$0xff] %vm37, %v27
    %39 = vst.msk [vmem:[%s2] sm:$0xff] %vm37, %v36
    // Predicated region
    $region10: #{tpu_custom_call.1} parent=1 // pred_check
      _
    $region11: #{tpu_custom_call.1} parent=1 // pred_check_branch
      %41 = sbr.rel (0) target = $region13
    $region12: #{tpu_custom_call.1} parent=1 // pred_region
      _
    $region13: #{tpu_custom_call.1} parent=1 // pred_fallthru
      _
    // Predicated region
    $region14: #{tpu_custom_call.1} parent=1 // pred_check
      _
    $region15: #{tpu_custom_call.1} parent=1 // pred_check_branch
      %43 = sbr.rel (0) target = $region17
    $region16: #{tpu_custom_call.1} parent=1 // pred_region
      _
    $region17: #{tpu_custom_call.1} parent=1 // pred_fallthru
      _
    // Predicated region
    $region18: #{tpu_custom_call.1} parent=1 // pred_check
      _
    $region19: #{tpu_custom_call.1} parent=1 // pred_check_branch
      %45 = sbr.rel (0) target = $region21
    $region20: #{tpu_custom_call.1} parent=1 // pred_region
      _
    $region21: #{tpu_custom_call.1} parent=1 // pred_fallthru
      _
    // Predicated region
    $region22: #{tpu_custom_call.1} parent=1 // pred_check
      _
    $region23: #{tpu_custom_call.1} parent=1 // pred_check_branch
      %47 = sbr.rel (0) target = $region25
    $region24: #{tpu_custom_call.1} parent=1 // pred_region
      _
    $region25: #{tpu_custom_call.1} parent=1 // pred_fallthru
      _
    %48 = vsyncpa [#allocation3], 1

</llo_original>
